<compile_context>
chip_gen: v5e
topology: v5e:2x2
jax: 0.10.0
libtpu: 0.0.40
codegen_flags: <defaults>
</compile_context>

<pallas_src>
from functools import partial

import numpy as np
import jax
import jax.numpy as jnp
from jax.experimental import pallas as pl
from jax.experimental.pallas import tpu as pltpu


def _round_up(x, m):
    return (x + m - 1) // m * m


# ----------------------------------------------------------------------------
# Fused Pallas kernel: both paths in one VMEM-resident invocation.
#   node path : new_x = relu((Mavg @ edge_attr) @ W_lgnode + b_lgnode)
#   rev  path : rev_x = (A @ G) @ relu(x @ W_lgedge + b_lgedge)
# ----------------------------------------------------------------------------
def _fused_kernel(mavg_ref, eattr_ref, wn_ref, bn_ref,
                  x_ref, we_ref, be_ref, ag_ref,
                  newx_ref, revx_ref):
    # ---- node path ----
    # uniq_edge_attr = Mavg @ edge_attr (sequential reciprocal-edge averaging;
    # Mavg kept f32 so deep duplication chains stay exact).
    t = jnp.dot(mavg_ref[...], eattr_ref[...].astype(jnp.float32),
                preferred_element_type=jnp.float32)
    # inner line_module node branch (bf16 MXU matmul, f32 accumulate/epilogue)
    y = jnp.dot(t.astype(jnp.bfloat16), wn_ref[...],
                preferred_element_type=jnp.float32)
    newx_ref[...] = jnp.maximum(y + bn_ref[...], 0.0)

    # ---- reverse path ----
    # h = relu(x @ W + b): row-wise, so the lg_src gather commutes past it and
    # is folded into AG on the host (rev_x = (A@G) @ h).
    h = jnp.dot(x_ref[...], we_ref[...], preferred_element_type=jnp.float32)
    h = jnp.maximum(h + be_ref[...], 0.0)
    # AG kept f32 (entries like 1/3 are not bf16-exact); f32 epilogue on purpose
    # (v5e has no bf16 VPU, and padded lanes/rows must stay exactly zero).
    revx_ref[...] = jnp.dot(ag_ref[...], h, preferred_element_type=jnp.float32)


def _call_fused(mavg, eattr, wn, bn, x_p, we, be, ag):
    Eu_p, E_p = mavg.shape
    Fe_p = wn.shape[1]
    N_pr, N_pc = ag.shape
    Fx_p = we.shape[1]

    flops = (2 * Eu_p * E_p * Fe_p + 2 * Eu_p * Fe_p * Fe_p
             + 2 * N_pc * Fx_p * Fx_p + 2 * N_pr * N_pc * Fx_p)
    in_bytes = (mavg.size * 4 + eattr.size * 2 + wn.size * 2 + bn.size * 4
                + x_p.size * 2 + we.size * 2 + be.size * 4 + ag.size * 4)
    out_bytes = 4 * (Eu_p * Fe_p + N_pr * Fx_p)
    total_bytes = in_bytes + out_bytes
    # explicit scoped-VMEM limit sized from the actual padded operands
    vmem_limit = int(min(64 * 2**20, max(4 * 2**20, 2 * total_bytes)))

    vspec = pl.BlockSpec(memory_space=pltpu.MemorySpace.VMEM)
    return pl.pallas_call(
        _fused_kernel,
        out_shape=(jax.ShapeDtypeStruct((Eu_p, Fe_p), jnp.float32),
                   jax.ShapeDtypeStruct((N_pr, Fx_p), jnp.float32)),
        in_specs=[vspec] * 8,
        out_specs=(vspec, vspec),
        compiler_params=pltpu.CompilerParams(vmem_limit_bytes=vmem_limit),
        cost_estimate=pl.CostEstimate(flops=int(flops), transcendentals=0,
                                      bytes_accessed=int(total_bytes)),
    )(mavg, eattr, wn, bn, x_p, we, be, ag)


# ----------------------------------------------------------------------------
# Host-side graph structure (exact reproduction of the reference semantics,
# including its `dummy` running-sum and range(2) quirks), built ONCE per
# topology and cached as padded device arrays.
# ----------------------------------------------------------------------------
def _average_reciprocal_edges_structure(edge_index_np, num_edges):
    """new_edge_attr = Mavg @ edge_attr reproduces the sequential (a+b)/2 dedup
    of the reference exactly (the averaging is linear in edge_attr)."""
    edge_tuples = [(int(edge_index_np[0, i]), int(edge_index_np[1, i]))
                   for i in range(num_edges)]
    edge_dict = {}
    for i, (u, v) in enumerate(edge_tuples):
        row_i = np.zeros((num_edges,), np.float32)
        row_i[i] = 1.0
        if (v, u) in edge_dict:
            edge_dict[(v, u)] = (edge_dict[(v, u)] + row_i) / 2.0
        elif (u, v) in edge_dict:
            edge_dict[(u, v)] = (edge_dict[(u, v)] + row_i) / 2.0
        else:
            edge_dict[(u, v)] = row_i
    unique_edges = list(edge_dict.keys())
    Mavg = np.stack(list(edge_dict.values()), axis=0)
    new_edge_index = np.array(unique_edges, dtype=np.int32).T.copy()
    return new_edge_index, Mavg


def _line_graph_structure(num_nodes, uniq_edge_index):
    """Line-graph connectivity.  lg_src_node[e] is the original node whose
    feature row becomes line-graph edge attribute e (pure row selection)."""
    Eu = uniq_edge_index.shape[1]
    node_neighbours = {i: {} for i in range(num_nodes)}
    old_node_new_edge = {i: [] for i in range(num_nodes)}
    for i in range(Eu):
        na = int(uniq_edge_index[0, i])
        nb = int(uniq_edge_index[1, i])
        node_neighbours[na][nb] = i
        node_neighbours[nb][na] = i

    lg_edge_index = [[], []]
    lg_src_node = []
    edge_nr = 0
    # NOTE: the reference iterates range(edge_index.shape[0]) which is range(2);
    # reproduced exactly here.
    for old_edge_i in range(uniq_edge_index.shape[0]):
        na = int(uniq_edge_index[0, old_edge_i])
        nb = int(uniq_edge_index[1, old_edge_i])
        for node in (na, nb):
            for key in node_neighbours[node].keys():
                old_edge_j = node_neighbours[node][key]
                lg_edge_index[0].append(old_edge_i)
                lg_edge_index[1].append(old_edge_j)
                lg_src_node.append(node)
                old_node_new_edge[node].append(edge_nr)
                edge_nr += 1
    lg_edge_index = np.array(lg_edge_index, dtype=np.int32)
    return lg_edge_index, lg_src_node, node_neighbours, old_node_new_edge


def _reverse_line_graph_structure(node_neighbours, old_node_new_edge, num_lg_edges):
    """rev_src[k] indexes new_x for reverse edge k (pure gather).  A reproduces
    the reference's `dummy` aliasing bug (running cumulative sum across nodes).
    WARNING: nodes with no incident unique edge divide by zero exactly like the
    reference (inf/nan rows); such graphs are broken in the original too."""
    rev_src = []
    for na in node_neighbours.keys():
        for nb in node_neighbours[na].keys():
            rev_src.append(node_neighbours[na][nb])

    N = len(old_node_new_edge)
    A = np.zeros((N, max(num_lg_edges, 1)), np.float32)
    cum = np.zeros((max(num_lg_edges, 1),), np.float32)  # plays the role of `dummy`
    for node in old_node_new_edge.keys():
        for e in old_node_new_edge[node]:
            cum[e] += 1.0
        denom = float(len(old_node_new_edge[node]))
        with np.errstate(divide="ignore", invalid="ignore"):
            A[node] = cum / denom
    return rev_src, (A[:, :num_lg_edges] if num_lg_edges > 0 else A)


_GRAPH_CACHE = {}


def get_graph_structure(edge_index_np, num_nodes):
    ei = np.ascontiguousarray(np.asarray(edge_index_np, dtype=np.int32))
    key = (int(num_nodes), ei.shape, ei.tobytes())
    cached = _GRAPH_CACHE.get(key)
    if cached is not None:
        return cached

    E = ei.shape[1]
    uniq_ei, Mavg = _average_reciprocal_edges_structure(ei, E)
    lg_ei, lg_src, node_neighbours, old_node_new_edge = _line_graph_structure(
        num_nodes, uniq_ei)
    rev_src, A = _reverse_line_graph_structure(
        node_neighbours, old_node_new_edge, lg_ei.shape[1])

    Eu, Elg = uniq_ei.shape[1], lg_ei.shape[1]

    # Fold the pure-selection gather G (one-hot of lg_src) into the reverse
    # scatter matrix:  rev_x = A @ relu(x[lg_src] @ W + b) = (A @ G) @ relu(x @ W + b)
    AG = np.zeros((num_nodes, num_nodes), np.float32)
    for e in range(Elg):
        AG[:, lg_src[e]] += A[:, e]

    # Padding: rows (sublanes) -> multiple of 16 (bf16 packing friendly),
    # lanes / contraction dims -> multiple of 128.
    Eu_p = _round_up(max(Eu, 16), 16)
    E_p = _round_up(max(E, 128), 128)
    N_pr = _round_up(max(num_nodes, 16), 16)
    N_pc = _round_up(max(num_nodes, 128), 128)

    mavg_p = np.zeros((Eu_p, E_p), np.float32)
    mavg_p[:Eu, :E] = Mavg
    ag_p = np.zeros((N_pr, N_pc), np.float32)
    ag_p[:num_nodes, :num_nodes] = AG
    # NOTE: padded x rows (>= num_nodes) produce h = relu(b); they are masked by
    # the zero columns of ag_p (>= num_nodes), so results stay exact.

    struct = dict(
        num_nodes=int(num_nodes),
        num_uniq=int(Eu),
        num_lg_edges=int(Elg),
        # device-side padded structure matrices (kept f32: AG entries such as
        # 1/3 are not exactly representable in bf16).
        mavg=jnp.asarray(mavg_p, jnp.float32),
        ag=jnp.asarray(ag_p, jnp.float32),
        rev_src_idx=jnp.asarray(np.asarray(rev_src, np.int32)),
        # raw numpy copies kept for reference checking
        mavg_np=Mavg, a_np=A, lg_src_np=np.asarray(lg_src, np.int32),
        rev_src_np=np.asarray(rev_src, np.int32),
    )
    _GRAPH_CACHE[key] = struct
    return struct


# ----------------------------------------------------------------------------
# Synthetic inner `line_module` (Linear + ReLU on line-graph node / edge feats);
# its matmuls are fused INTO the Pallas kernel above.
# ----------------------------------------------------------------------------
def make_line_module_params(key, lg_node_dim, lg_edge_dim):
    k1, k2 = jax.random.split(key)
    return {
        "W_lgnode": 0.1 * jax.random.normal(k1, (lg_node_dim, lg_node_dim), jnp.float32),
        "b_lgnode": jnp.zeros((lg_node_dim,), jnp.float32),
        "W_lgedge": 0.1 * jax.random.normal(k2, (lg_edge_dim, lg_edge_dim), jnp.float32),
        "b_lgedge": jnp.zeros((lg_edge_dim,), jnp.float32),
    }


def pack_line_module_params(params):
    """One-time pad to lane-aligned layout; weights -> bf16, biases stay f32."""
    def pad_w(w):
        d0, d1 = w.shape
        p0, p1 = _round_up(d0, 128), _round_up(d1, 128)
        return jnp.zeros((p0, p1), jnp.bfloat16).at[:d0, :d1].set(
            w.astype(jnp.bfloat16))

    def pad_b(b):
        d = b.shape[0]
        p = _round_up(d, 128)
        return jnp.zeros((1, p), jnp.float32).at[0, :d].set(b)

    return {
        "W_lgnode": pad_w(params["W_lgnode"]),
        "b_lgnode": pad_b(params["b_lgnode"]),
        "W_lgedge": pad_w(params["W_lgedge"]),
        "b_lgedge": pad_b(params["b_lgedge"]),
    }


# ----------------------------------------------------------------------------
# LineWrapper.forward equivalent (dense device path is jitted per topology)
# ----------------------------------------------------------------------------
@partial(jax.jit, static_argnames=("n_nodes", "f_x", "f_e"))
def _forward_dense(packed, x, edge_attr, mavg, ag, rev_src_idx,
                   *, n_nodes, f_x, f_e):
    Fe_p = packed["W_lgnode"].shape[0]
    Fx_p = packed["W_lgedge"].shape[0]
    E_p = mavg.shape[1]
    N_pc = ag.shape[1]

    # Pad features ONCE into the aligned layout; bf16 MXU operands.
    eattr_p = jnp.zeros((E_p, Fe_p), jnp.bfloat16).at[
        :edge_attr.shape[0], :f_e].set(edge_attr.astype(jnp.bfloat16))
    x_p = jnp.zeros((N_pc, Fx_p), jnp.bfloat16).at[:x.shape[0], :f_x].set(
        x.astype(jnp.bfloat16))

    # ONE fused pallas_call: node path + reverse path, two output refs.
    new_x_pad, rev_x_pad = _call_fused(
        mavg, eattr_p, packed["W_lgnode"], packed["b_lgnode"],
        x_p, packed["W_lgedge"], packed["b_lgedge"], ag)

    # reverse_line_graph edge attrs: pure row-gather of new_x.
    # Gather full 128-lane rows first, then slice (avoids a narrow intermediate).
    rev_edge_attr = jnp.take(new_x_pad, rev_src_idx, axis=0)[:, :f_e]

    rev_x = rev_x_pad[:n_nodes, :f_x]
    return rev_x, rev_edge_attr


def line_wrapper_forward(packed_params, x, edge_index, edge_attr, state=None):
    x = jnp.asarray(x, jnp.float32)
    edge_attr = jnp.asarray(edge_attr, jnp.float32)
    ei_np = np.asarray(edge_index, dtype=np.int32)

    graph = get_graph_structure(ei_np, x.shape[0])   # cached per topology

    rev_x, rev_edge_attr = _forward_dense(
        packed_params, x, edge_attr,
        graph["mavg"], graph["ag"], graph["rev_src_idx"],
        n_nodes=int(x.shape[0]), f_x=int(x.shape[1]), f_e=int(edge_attr.shape[1]))
    return rev_x, rev_edge_attr, state


# ----------------------------------------------------------------------------
if __name__ == "__main__":
    key = jax.random.PRNGKey(0)
    kx, ke, kp = jax.random.split(key, 3)

    N, F_X, F_E = 4, 32, 32
    # Directed edges with reciprocal pairs (exercises the (a+b)/2 dedup);
    # chosen so the endpoints of unique edges 0 and 1 cover all nodes
    # (avoids the reference's division-by-zero path in reverse_line_graph).
    edge_index = jnp.array(
        [[0, 1, 2, 3, 1, 2, 0, 3],
         [1, 0, 3, 2, 2, 1, 3, 0]], dtype=jnp.int32)
    x = jax.random.normal(kx, (N, F_X), jnp.float32)
    edge_attr = jax.random.normal(ke, (edge_index.shape[1], F_E), jnp.float32)

    # line-graph node feature dim = F_E, line-graph edge feature dim = F_X
    params = make_line_module_params(kp, lg_node_dim=F_E, lg_edge_dim=F_X)
    packed = pack_line_module_params(params)

    out_x, out_edge_attr, out_state = line_wrapper_forward(
        packed, x, edge_index, edge_attr, state=None)
    jax.block_until_ready((out_x, out_edge_attr))

    # ---- pure f32 reference (original formulation, gather NOT folded) -------
    g = get_graph_structure(np.asarray(edge_index, np.int32), N)
    Mavg = g["mavg_np"]
    A = g["a_np"]
    lg_src = g["lg_src_np"]
    rev_src = g["rev_src_np"]
    x_np = np.asarray(x, np.float32)
    ea_np = np.asarray(edge_attr, np.float32)
    Wn, bn = np.asarray(params["W_lgnode"]), np.asarray(params["b_lgnode"])
    We, be = np.asarray(params["W_lgedge"]), np.asarray(params["b_lgedge"])
    new_x_ref = np.maximum((Mavg @ ea_np) @ Wn + bn, 0.0)
    lg_ea_ref = np.maximum(x_np[lg_src] @ We + be, 0.0)
    rev_x_ref = A @ lg_ea_ref
    rev_ea_ref = new_x_ref[rev_src]

    assert out_x.shape == (N, F_X)
    assert out_edge_attr.shape == rev_ea_ref.shape
    np.testing.assert_allclose(np.asarray(out_x), rev_x_ref, rtol=5e-2, atol=5e-2)
    np.testing.assert_allclose(np.asarray(out_edge_attr), rev_ea_ref,
                               rtol=5e-2, atol=5e-2)
    print("KERNEL_OK")
</pallas_src>

<mosaic_0001>
module attributes {stable_mosaic.version = 11 : i64} {
  func.func @_fused_kernel(%arg0: memref<16x128xf32, #tpu.memory_space<vmem>>, %arg1: memref<128x128xbf16, #tpu.memory_space<vmem>>, %arg2: memref<128x128xbf16, #tpu.memory_space<vmem>>, %arg3: memref<1x128xf32, #tpu.memory_space<vmem>>, %arg4: memref<128x128xbf16, #tpu.memory_space<vmem>>, %arg5: memref<128x128xbf16, #tpu.memory_space<vmem>>, %arg6: memref<1x128xf32, #tpu.memory_space<vmem>>, %arg7: memref<16x128xf32, #tpu.memory_space<vmem>>, %arg8: memref<16x128xf32, #tpu.memory_space<vmem>>, %arg9: memref<16x128xf32, #tpu.memory_space<vmem>>) attributes {dimension_semantics = [], scalar_prefetch = 0 : i64, scratch_operands = 0 : i64, tpu.core_type = #tpu.core_type<tc>} {
    %c0 = arith.constant 0 : index
    %c0_0 = arith.constant 0 : index
    %0 = vector.load %arg0[%c0, %c0_0] : memref<16x128xf32, #tpu.memory_space<vmem>>, vector<16x128xf32>
    %c0_1 = arith.constant 0 : index
    %c0_2 = arith.constant 0 : index
    %1 = vector.load %arg1[%c0_1, %c0_2] : memref<128x128xbf16, #tpu.memory_space<vmem>>, vector<128x128xbf16>
    %2 = arith.extf %1 : vector<128x128xbf16> to vector<128x128xf32>
    %cst = arith.constant dense<0.000000e+00> : vector<16x128xf32>
    %3 = tpu.matmul %0, %2, %cst {dimension_numbers = #tpu.dot_dimension_numbers<[1], [0], [0], [1], [0, 0, 1, 1], [], []>} : vector<16x128xf32>, vector<128x128xf32>, vector<16x128xf32> -> vector<16x128xf32>
    %4 = arith.truncf %3 : vector<16x128xf32> to vector<16x128xbf16>
    %c0_3 = arith.constant 0 : index
    %c0_4 = arith.constant 0 : index
    %5 = vector.load %arg2[%c0_3, %c0_4] : memref<128x128xbf16, #tpu.memory_space<vmem>>, vector<128x128xbf16>
    %cst_5 = arith.constant dense<0.000000e+00> : vector<16x128xf32>
    %6 = tpu.matmul %4, %5, %cst_5 {dimension_numbers = #tpu.dot_dimension_numbers<[1], [0], [0], [1], [0, 0, 1, 1], [], []>} : vector<16x128xbf16>, vector<128x128xbf16>, vector<16x128xf32> -> vector<16x128xf32>
    %c0_6 = arith.constant 0 : index
    %c0_7 = arith.constant 0 : index
    %7 = vector.load %arg3[%c0_6, %c0_7] : memref<1x128xf32, #tpu.memory_space<vmem>>, vector<1x128xf32>
    %8 = vector.broadcast %7 : vector<1x128xf32> to vector<16x128xf32>
    %9 = arith.addf %6, %8 : vector<16x128xf32>
    %cst_8 = arith.constant 0.000000e+00 : f32
    %10 = vector.broadcast %cst_8 : f32 to vector<16x128xf32>
    %11 = arith.maximumf %9, %10 : vector<16x128xf32>
    %c0_9 = arith.constant 0 : index
    %c0_10 = arith.constant 0 : index
    %12 = vector.load %arg8[%c0_9, %c0_10] : memref<16x128xf32, #tpu.memory_space<vmem>>, vector<16x128xf32>
    tpu.vector_store %arg8[%c0_9, %c0_10], %11 {strides = array<i32>} : memref<16x128xf32, #tpu.memory_space<vmem>>, vector<16x128xf32>,
    %c0_11 = arith.constant 0 : index
    %c0_12 = arith.constant 0 : index
    %13 = vector.load %arg4[%c0_11, %c0_12] : memref<128x128xbf16, #tpu.memory_space<vmem>>, vector<128x128xbf16>
    %c0_13 = arith.constant 0 : index
    %c0_14 = arith.constant 0 : index
    %14 = vector.load %arg5[%c0_13, %c0_14] : memref<128x128xbf16, #tpu.memory_space<vmem>>, vector<128x128xbf16>
    %cst_15 = arith.constant dense<0.000000e+00> : vector<128x128xf32>
    %15 = tpu.matmul %13, %14, %cst_15 {dimension_numbers = #tpu.dot_dimension_numbers<[1], [0], [0], [1], [0, 0, 1, 1], [], []>} : vector<128x128xbf16>, vector<128x128xbf16>, vector<128x128xf32> -> vector<128x128xf32>
    %c0_16 = arith.constant 0 : index
    %c0_17 = arith.constant 0 : index
    %16 = vector.load %arg6[%c0_16, %c0_17] : memref<1x128xf32, #tpu.memory_space<vmem>>, vector<1x128xf32>
    %17 = vector.broadcast %16 : vector<1x128xf32> to vector<128x128xf32>
    %18 = arith.addf %15, %17 : vector<128x128xf32>
    %cst_18 = arith.constant 0.000000e+00 : f32
    %19 = vector.broadcast %cst_18 : f32 to vector<128x128xf32>
    %20 = arith.maximumf %18, %19 : vector<128x128xf32>
    %c0_19 = arith.constant 0 : index
    %c0_20 = arith.constant 0 : index
    %21 = vector.load %arg7[%c0_19, %c0_20] : memref<16x128xf32, #tpu.memory_space<vmem>>, vector<16x128xf32>
    %cst_21 = arith.constant dense<0.000000e+00> : vector<16x128xf32>
    %22 = tpu.matmul %21, %20, %cst_21 {dimension_numbers = #tpu.dot_dimension_numbers<[1], [0], [0], [1], [0, 0, 1, 1], [], []>} : vector<16x128xf32>, vector<128x128xf32>, vector<16x128xf32> -> vector<16x128xf32>
    %c0_22 = arith.constant 0 : index
    %c0_23 = arith.constant 0 : index
    %23 = vector.load %arg9[%c0_22, %c0_23] : memref<16x128xf32, #tpu.memory_space<vmem>>, vector<16x128xf32>
    tpu.vector_store %arg9[%c0_22, %c0_23], %22 {strides = array<i32>} : memref<16x128xf32, #tpu.memory_space<vmem>>, vector<16x128xf32>,
    return
  }
}

</mosaic_0001>

<llo_original>
// kernel: _forward_dense.1
$region0: #{_forward_dense.1}
  #allocation0 [shape = 'u32[]', space=smem, size = 0x4, offset = 0x4, fixed_abs, tag = 'smem constant byte address 0x4 - core index']
  #allocation1 [shape = 'u32[72,128]{1,0:T(1,128)}', space=vmem, size = 0x9000, scoped, tag = 'internal scratch']
  %s0 = inlined_call_operand.vmem [shape: f32[16,128], index: 0, kind: input, shape index: {}]
  %s1 = inlined_call_operand.vmem [shape: bf16[128,128], index: 1, kind: input, shape index: {}]
  %s2 = inlined_call_operand.vmem [shape: bf16[128,128], index: 2, kind: input, shape index: {}]
  %s3 = inlined_call_operand.vmem [shape: f32[1,128], index: 3, kind: input, shape index: {}]
  %s4 = inlined_call_operand.vmem [shape: bf16[128,128], index: 4, kind: input, shape index: {}]
  %s5 = inlined_call_operand.vmem [shape: bf16[128,128], index: 5, kind: input, shape index: {}]
  %s6 = inlined_call_operand.vmem [shape: f32[1,128], index: 6, kind: input, shape index: {}]
  %s7 = inlined_call_operand.hbm [shape: f32[16,128], index: 7, kind: input, shape index: {}]
  %s8 = inlined_call_operand.vmem [shape: f32[16,128], index: 8, kind: output, shape index: {0}]
  %s9 = inlined_call_operand.vmem [shape: f32[16,128], index: 9, kind: output, shape index: {1}]
  %10 = xla_tuple %s8, %s9
  %s11 = sld [smem:[#allocation0]]
  $region54: #{_forward_dense.1} parent=0
    _
  %s13 = ssub.s32 1, %s11
  %s14 = scalar_select 0, %s13, %s11
  $region1: #{_forward_dense.1} parent=0
    #allocation2 [shape = 'u8[8192]{0}', space=vmem, size = 0x2000, scoped, tag = 'input window, operand 7, single buffered']
    #allocation3 [shape = 's32[1]{0}', space=sflag, size = 0x4, scoped, tag = 'scoped memory for _forward_dense.1']
    %15 = vsyncpa [#allocation3], 0
    // Predicated region
    $region2: #{_forward_dense.1} parent=1 // pred_check
      _
    $region3: #{_forward_dense.1} parent=1 // pred_check_branch
      %17 = sbr.rel (0) target = $region5
    $region4: #{_forward_dense.1} parent=1 // pred_region
      _
    $region5: #{_forward_dense.1} parent=1 // pred_fallthru
      _
    // Predicated region
    $region6: #{_forward_dense.1} parent=1 // pred_check
      _
    $region7: #{_forward_dense.1} parent=1 // pred_check_branch
      %19 = sbr.rel (0) target = $region9
    $region8: #{_forward_dense.1} parent=1 // pred_region
      _
    $region9: #{_forward_dense.1} parent=1 // pred_fallthru
      _
    // Predicated region
    $region10: #{_forward_dense.1} parent=1 // pred_check
      _
    $region11: #{_forward_dense.1} parent=1 // pred_check_branch
      %21 = sbr.rel (0) target = $region13
    $region12: #{_forward_dense.1} parent=1 // pred_region
      _
    $region13: #{_forward_dense.1} parent=1 // pred_fallthru
      _
    // Predicated region
    $region14: #{_forward_dense.1} parent=1 // pred_check
      _
    $region15: #{_forward_dense.1} parent=1 // pred_check_branch
      %23 = sbr.rel (0) target = $region17
    $region16: #{_forward_dense.1} parent=1 // pred_region
      _
    $region17: #{_forward_dense.1} parent=1 // pred_fallthru
      _
    // Predicated region
    $region18: #{_forward_dense.1} parent=1 // pred_check
      _
    $region19: #{_forward_dense.1} parent=1 // pred_check_branch
      %25 = sbr.rel (0) target = $region21
    $region20: #{_forward_dense.1} parent=1 // pred_region
      _
    $region21: #{_forward_dense.1} parent=1 // pred_fallthru
      _
    // Predicated region
    $region22: #{_forward_dense.1} parent=1 // pred_check
      _
    $region23: #{_forward_dense.1} parent=1 // pred_check_branch
      %27 = sbr.rel (0) target = $region25
    $region24: #{_forward_dense.1} parent=1 // pred_region
      _
    $region25: #{_forward_dense.1} parent=1 // pred_fallthru
      _
    // Predicated region
    $region26: #{_forward_dense.1} parent=1 // pred_check
      _
    $region27: #{_forward_dense.1} parent=1 // pred_check_branch
      %29 = sbr.rel (0) target = $region29
    $region28: #{_forward_dense.1} parent=1 // pred_region
      _
    $region29: #{_forward_dense.1} parent=1 // pred_fallthru
      _
    // Predicated region
    $region30: #{_forward_dense.1} parent=1 // pred_check
      _
    $region31: #{_forward_dense.1} parent=1 // pred_check_branch
      %31 = sbr.rel (0) target = $region33
    $region32: #{_forward_dense.1} parent=1 // pred_region
      %33 = vsyncadd [#allocation3], 0
      %s34 = sshll.u32 %s7, 4
      %s35 = int_to_ptr.hbm [resolvable:$true] %s34
      %s36 = sshll.u32 [#allocation2], 4
      %s37 = int_to_ptr.vmem [resolvable:$true] %s36
      %42 = dma.hbm_to_vmem [thread:$0]  %s35, 256, %s37, [#allocation3], 128, 128, 8
    $region33: #{_forward_dense.1} parent=1 // pred_fallthru
      _
    // Predicated region
    $region34: #{_forward_dense.1} parent=1 // pred_check
      _
    $region35: #{_forward_dense.1} parent=1 // pred_check_branch
      %44 = sbr.rel (0) target = $region37
    $region36: #{_forward_dense.1} parent=1 // pred_region
      %46 = dma.done [#allocation3], 256
    $region37: #{_forward_dense.1} parent=1 // pred_fallthru
      _
    %v47 = vld [vmem:[%s0] sm:$0xff]
    %v48 = vld [vmem:[%s0 + $0x8] sm:$0xff]
    %v49 = vld [vmem:[%s1] sm:$0xf]
    %v50 = vld [vmem:[%s1 + $0x4] sm:$0xf]
    %v51 = vld [vmem:[%s1 + $0x8] sm:$0xf]
    %v52 = vld [vmem:[%s1 + $0xc] sm:$0xf]
    %v53 = vld [vmem:[%s1 + $0x10] sm:$0xf]
    %v54 = vld [vmem:[%s1 + $0x14] sm:$0xf]
    %v55 = vld [vmem:[%s1 + $0x18] sm:$0xf]
    %v56 = vld [vmem:[%s1 + $0x1c] sm:$0xf]
    %v57 = vld [vmem:[%s1 + $0x20] sm:$0xf]
    %v58 = vld [vmem:[%s1 + $0x24] sm:$0xf]
    %v59 = vld [vmem:[%s1 + $0x28] sm:$0xf]
    %v60 = vld [vmem:[%s1 + $0x2c] sm:$0xf]
    %v61 = vld [vmem:[%s1 + $0x30] sm:$0xf]
    %v62 = vld [vmem:[%s1 + $0x34] sm:$0xf]
    %v63 = vld [vmem:[%s1 + $0x38] sm:$0xf]
    %v64 = vld [vmem:[%s1 + $0x3c] sm:$0xf]
    %v65 = vunpack.c.l.bf16 %v49
    %v66 = vunpack.c.l.bf16 %v50
    %v67 = vunpack.c.l.bf16 %v51
    %v68 = vunpack.c.l.bf16 %v52
    %v69 = vunpack.c.l.bf16 %v53
    %v70 = vunpack.c.l.bf16 %v54
    %v71 = vunpack.c.l.bf16 %v55
    %v72 = vunpack.c.l.bf16 %v56
    %v73 = vunpack.c.l.bf16 %v57
    %v74 = vunpack.c.l.bf16 %v58
    %v75 = vunpack.c.l.bf16 %v59
    %v76 = vunpack.c.l.bf16 %v60
    %v77 = vunpack.c.l.bf16 %v61
    %v78 = vunpack.c.l.bf16 %v62
    %v79 = vunpack.c.l.bf16 %v63
    %v80 = vunpack.c.l.bf16 %v64
    %81 = vmatpush.msra.mxu0 %v80
    %82 = vmatpush.msra.mxu0 %v79
    %83 = vmatpush.msra.mxu0 %v78
    %84 = vmatpush.msra.mxu0 %v77
    %85 = vmatpush.msra.mxu0 %v76
    %86 = vmatpush.msra.mxu0 %v75
    %87 = vmatpush.msra.mxu0 %v74
    %88 = vmatpush.msra.mxu0 %v73
    %89 = vmatpush.msra.mxu0 %v72
    %90 = vmatpush.msra.mxu0 %v71
    %91 = vmatpush.msra.mxu0 %v70
    %92 = vmatpush.msra.mxu0 %v69
    %93 = vmatpush.msra.mxu0 %v68
    %94 = vmatpush.msra.mxu0 %v67
    %95 = vmatpush.msra.mxu0 %v66
    %96 = vmatpush.msra.mxu0 %v65
    %97 = vmatmul.f32.gmra.mxu0 %v47
    %v98 = vpop.f32.mrf.mxu0
    %v99 = vadd.f32 0.0, %v98
    %100 = vmatmul.f32.gmra.mxu0 %v48
    %v101 = vpop.f32.mrf.mxu0
    %v102 = vadd.f32 0.0, %v101
    %103 = vdwg.mxu0
    %v104 = vpack.c.bf16 %v102, %v99
    %v105 = vld [vmem:[%s2] sm:$0xf]
    %v106 = vld [vmem:[%s2 + $0x4] sm:$0xf]
    %v107 = vld [vmem:[%s2 + $0x8] sm:$0xf]
    %v108 = vld [vmem:[%s2 + $0xc] sm:$0xf]
    %v109 = vld [vmem:[%s2 + $0x10] sm:$0xf]
    %v110 = vld [vmem:[%s2 + $0x14] sm:$0xf]
    %v111 = vld [vmem:[%s2 + $0x18] sm:$0xf]
    %v112 = vld [vmem:[%s2 + $0x1c] sm:$0xf]
    %v113 = vld [vmem:[%s2 + $0x20] sm:$0xf]
    %v114 = vld [vmem:[%s2 + $0x24] sm:$0xf]
    %v115 = vld [vmem:[%s2 + $0x28] sm:$0xf]
    %v116 = vld [vmem:[%s2 + $0x2c] sm:$0xf]
    %v117 = vld [vmem:[%s2 + $0x30] sm:$0xf]
    %v118 = vld [vmem:[%s2 + $0x34] sm:$0xf]
    %v119 = vld [vmem:[%s2 + $0x38] sm:$0xf]
    %v120 = vld [vmem:[%s2 + $0x3c] sm:$0xf]
    %v121 = vld [vmem:[%s3] sm:$0x1]
    %v123 = vperm.slane %v121, 0
    %v141 = vunpack.c.l.b16 %v105
    %v142 = vunpack.c.l.b16 %v106
    %v143 = vunpack.c.l.b16 %v107
    %v144 = vunpack.c.l.b16 %v108
    %v145 = vunpack.c.l.b16 %v109
    %v146 = vunpack.c.l.b16 %v110
    %v147 = vunpack.c.l.b16 %v111
    %v148 = vunpack.c.l.b16 %v112
    %v149 = vunpack.c.l.b16 %v113
    %v150 = vunpack.c.l.b16 %v114
    %v151 = vunpack.c.l.b16 %v115
    %v152 = vunpack.c.l.b16 %v116
    %v153 = vunpack.c.l.b16 %v117
    %v154 = vunpack.c.l.b16 %v118
    %v155 = vunpack.c.l.b16 %v119
    %v156 = vunpack.c.l.b16 %v120
    %v157 = vpack.c.b16 %v142, %v141
    %v158 = vpack.c.b16 %v144, %v143
    %v159 = vpack.c.b16 %v146, %v145
    %v160 = vpack.c.b16 %v148, %v147
    %v161 = vpack.c.b16 %v150, %v149
    %v162 = vpack.c.b16 %v152, %v151
    %v163 = vpack.c.b16 %v154, %v153
    %v164 = vpack.c.b16 %v156, %v155
    %173 = vmatpush.bf16.msra.mxu0 %v164
    %174 = vmatpush.bf16.msra.mxu0 %v163
    %175 = vmatpush.bf16.msra.mxu0 %v162
    %176 = vmatpush.bf16.msra.mxu0 %v161
    %177 = vmatpush.bf16.msra.mxu0 %v160
    %178 = vmatpush.bf16.msra.mxu0 %v159
    %179 = vmatpush.bf16.msra.mxu0 %v158
    %180 = vmatpush.bf16.msra.mxu0 %v157
    %181 = vmatmul.bf16.gmra.mxu0 %v104
    %v182 = vpop.f32.mrf.mxu0
    %v183 = vadd.f32 %v123, %v182
    %v184 = vpop.f32.mrf.mxu0
    %v185 = vadd.f32 %v123, %v184
    %186 = vdwg.mxu0
    %v187 = vmax.f32 %v183, 0.0
    %v188 = vmax.f32 %v185, 0.0
    %189 = vst [vmem:[%s8] sm:$0xff] %v187
    %190 = vst [vmem:[%s8 + $0x8] sm:$0xff] %v188
    %v191 = vld [vmem:[%s4] sm:$0xf]
    %v192 = vld [vmem:[%s4 + $0x4] sm:$0xf]
    %v193 = vld [vmem:[%s4 + $0x8] sm:$0xf]
    %v194 = vld [vmem:[%s4 + $0xc] sm:$0xf]
    %v195 = vld [vmem:[%s4 + $0x10] sm:$0xf]
    %v196 = vld [vmem:[%s4 + $0x14] sm:$0xf]
    %v197 = vld [vmem:[%s4 + $0x18] sm:$0xf]
    %v198 = vld [vmem:[%s4 + $0x1c] sm:$0xf]
    %v199 = vld [vmem:[%s4 + $0x20] sm:$0xf]
    %v200 = vld [vmem:[%s4 + $0x24] sm:$0xf]
    %v201 = vld [vmem:[%s4 + $0x28] sm:$0xf]
    %v202 = vld [vmem:[%s4 + $0x2c] sm:$0xf]
    %v203 = vld [vmem:[%s4 + $0x30] sm:$0xf]
    %v204 = vld [vmem:[%s4 + $0x34] sm:$0xf]
    %v205 = vld [vmem:[%s4 + $0x38] sm:$0xf]
    %v206 = vld [vmem:[%s4 + $0x3c] sm:$0xf]
    %v207 = vld [vmem:[%s5] sm:$0xf]
    %v208 = vld [vmem:[%s5 + $0x4] sm:$0xf]
    %v209 = vld [vmem:[%s5 + $0x8] sm:$0xf]
    %v210 = vld [vmem:[%s5 + $0xc] sm:$0xf]
    %v211 = vld [vmem:[%s5 + $0x10] sm:$0xf]
    %v212 = vld [vmem:[%s5 + $0x14] sm:$0xf]
    %v213 = vld [vmem:[%s5 + $0x18] sm:$0xf]
    %v214 = vld [vmem:[%s5 + $0x1c] sm:$0xf]
    %v215 = vld [vmem:[%s5 + $0x20] sm:$0xf]
    %v216 = vld [vmem:[%s5 + $0x24] sm:$0xf]
    %v217 = vld [vmem:[%s5 + $0x28] sm:$0xf]
    %v218 = vld [vmem:[%s5 + $0x2c] sm:$0xf]
    %v219 = vld [vmem:[%s5 + $0x30] sm:$0xf]
    %v220 = vld [vmem:[%s5 + $0x34] sm:$0xf]
    %v221 = vld [vmem:[%s5 + $0x38] sm:$0xf]
    %v222 = vld [vmem:[%s5 + $0x3c] sm:$0xf]
    %v223 = vld [vmem:[%s6] sm:$0x1]
    %v225 = vperm.slane %v223, 0
    %v243 = vunpack.c.l.b16 %v191
    %v244 = vunpack.c.l.b16 %v192
    %v245 = vunpack.c.l.b16 %v193
    %v246 = vunpack.c.l.b16 %v194
    %v247 = vunpack.c.l.b16 %v195
    %v248 = vunpack.c.l.b16 %v196
    %v249 = vunpack.c.l.b16 %v197
    %v250 = vunpack.c.l.b16 %v198
    %v251 = vunpack.c.l.b16 %v199
    %v252 = vunpack.c.l.b16 %v200
    %v253 = vunpack.c.l.b16 %v201
    %v254 = vunpack.c.l.b16 %v202
    %v255 = vunpack.c.l.b16 %v203
    %v256 = vunpack.c.l.b16 %v204
    %v257 = vunpack.c.l.b16 %v205
    %v258 = vunpack.c.l.b16 %v206
    %v259 = vpack.c.b16 %v244, %v243
    %v260 = vpack.c.b16 %v246, %v245
    %v261 = vpack.c.b16 %v248, %v247
    %v262 = vpack.c.b16 %v250, %v249
    %v263 = vpack.c.b16 %v252, %v251
    %v264 = vpack.c.b16 %v254, %v253
    %v265 = vpack.c.b16 %v256, %v255
    %v266 = vpack.c.b16 %v258, %v257
    %v291 = vunpack.c.l.b16 %v207
    %v292 = vunpack.c.l.b16 %v208
    %v293 = vunpack.c.l.b16 %v209
    %v294 = vunpack.c.l.b16 %v210
    %v295 = vunpack.c.l.b16 %v211
    %v296 = vunpack.c.l.b16 %v212
    %v297 = vunpack.c.l.b16 %v213
    %v298 = vunpack.c.l.b16 %v214
    %v299 = vunpack.c.l.b16 %v215
    %v300 = vunpack.c.l.b16 %v216
    %v301 = vunpack.c.l.b16 %v217
    %v302 = vunpack.c.l.b16 %v218
    %v303 = vunpack.c.l.b16 %v219
    %v304 = vunpack.c.l.b16 %v220
    %v305 = vunpack.c.l.b16 %v221
    %v306 = vunpack.c.l.b16 %v222
    %v307 = vpack.c.b16 %v292, %v291
    %v308 = vpack.c.b16 %v294, %v293
    %v309 = vpack.c.b16 %v296, %v295
    %v310 = vpack.c.b16 %v298, %v297
    %v311 = vpack.c.b16 %v300, %v299
    %v312 = vpack.c.b16 %v302, %v301
    %v313 = vpack.c.b16 %v304, %v303
    %v314 = vpack.c.b16 %v306, %v305
    %323 = vmatpush.bf16.msra.mxu0 %v314
    %324 = vmatpush.bf16.msra.mxu0 %v313
    %325 = vmatpush.bf16.msra.mxu0 %v312
    %326 = vmatpush.bf16.msra.mxu0 %v311
    %327 = vmatpush.bf16.msra.mxu0 %v310
    %328 = vmatpush.bf16.msra.mxu0 %v309
    %329 = vmatpush.bf16.msra.mxu0 %v308
    %330 = vmatpush.bf16.msra.mxu0 %v307
    %331 = vmatmul.bf16.gmra.mxu0 %v259
    %v332 = vpop.f32.mrf.mxu0
    %v333 = vadd.f32 %v225, %v332
    %v334 = vpop.f32.mrf.mxu0
    %v335 = vadd.f32 %v225, %v334
    %336 = vmatmul.bf16.gmra.mxu0 %v260
    %v337 = vpop.f32.mrf.mxu0
    %v338 = vadd.f32 %v225, %v337
    %v339 = vpop.f32.mrf.mxu0
    %v340 = vadd.f32 %v225, %v339
    %341 = vmatmul.bf16.gmra.mxu0 %v261
    %v342 = vpop.f32.mrf.mxu0
    %v343 = vadd.f32 %v225, %v342
    %v344 = vpop.f32.mrf.mxu0
    %v345 = vadd.f32 %v225, %v344
    %346 = vmatmul.bf16.gmra.mxu0 %v262
    %v347 = vpop.f32.mrf.mxu0
    %v348 = vadd.f32 %v225, %v347
    %v349 = vpop.f32.mrf.mxu0
    %v350 = vadd.f32 %v225, %v349
    %351 = vmatmul.bf16.gmra.mxu0 %v263
    %v352 = vpop.f32.mrf.mxu0
    %v353 = vadd.f32 %v225, %v352
    %v354 = vpop.f32.mrf.mxu0
    %v355 = vadd.f32 %v225, %v354
    %356 = vmatmul.bf16.gmra.mxu0 %v264
    %v357 = vpop.f32.mrf.mxu0
    %v358 = vadd.f32 %v225, %v357
    %v359 = vpop.f32.mrf.mxu0
    %v360 = vadd.f32 %v225, %v359
    %361 = vmatmul.bf16.gmra.mxu0 %v265
    %v362 = vpop.f32.mrf.mxu0
    %v363 = vadd.f32 %v225, %v362
    %v364 = vpop.f32.mrf.mxu0
    %v365 = vadd.f32 %v225, %v364
    %366 = vmatmul.bf16.gmra.mxu0 %v266
    %v367 = vpop.f32.mrf.mxu0
    %v368 = vadd.f32 %v225, %v367
    %v369 = vpop.f32.mrf.mxu0
    %v370 = vadd.f32 %v225, %v369
    %371 = vdwg.mxu0
    %v372 = vmax.f32 %v333, 0.0
    %v373 = vmax.f32 %v335, 0.0
    %v374 = vmax.f32 %v338, 0.0
    %v375 = vmax.f32 %v340, 0.0
    %v376 = vmax.f32 %v343, 0.0
    %v377 = vmax.f32 %v345, 0.0
    %v378 = vmax.f32 %v348, 0.0
    %v379 = vmax.f32 %v350, 0.0
    %v380 = vmax.f32 %v353, 0.0
    %v381 = vmax.f32 %v355, 0.0
    %v382 = vmax.f32 %v358, 0.0
    %v383 = vmax.f32 %v360, 0.0
    %v384 = vmax.f32 %v363, 0.0
    %v385 = vmax.f32 %v365, 0.0
    %v386 = vmax.f32 %v368, 0.0
    %v387 = vmax.f32 %v370, 0.0
    %v388 = vld [vmem:[#allocation2] sm:$0xff]
    %v389 = vld [vmem:[#allocation2 + $0x8] sm:$0xff]
    %390 = vmatpush.msra.mxu0 %v387
    %391 = vmatpush.msra.mxu0 %v386
    %392 = vmatpush.msra.mxu0 %v385
    %393 = vmatpush.msra.mxu0 %v384
    %394 = vmatpush.msra.mxu0 %v383
    %395 = vmatpush.msra.mxu0 %v382
    %396 = vmatpush.msra.mxu0 %v381
    %397 = vmatpush.msra.mxu0 %v380
    %398 = vmatpush.msra.mxu0 %v379
    %399 = vmatpush.msra.mxu0 %v378
    %400 = vmatpush.msra.mxu0 %v377
    %401 = vmatpush.msra.mxu0 %v376
    %402 = vmatpush.msra.mxu0 %v375
    %403 = vmatpush.msra.mxu0 %v374
    %404 = vmatpush.msra.mxu0 %v373
    %405 = vmatpush.msra.mxu0 %v372
    %406 = vmatmul.f32.gmra.mxu0 %v388
    %v407 = vpop.f32.mrf.mxu0
    %v408 = vadd.f32 0.0, %v407
    %409 = vmatmul.f32.gmra.mxu0 %v389
    %v410 = vpop.f32.mrf.mxu0
    %v411 = vadd.f32 0.0, %v410
    %412 = vdwg.mxu0
    %413 = vst [vmem:[%s9] sm:$0xff] %v408
    %414 = vst [vmem:[%s9 + $0x8] sm:$0xff] %v411
    // Predicated region
    $region38: #{_forward_dense.1} parent=1 // pred_check
      _
    $region39: #{_forward_dense.1} parent=1 // pred_check_branch
      %416 = sbr.rel (0) target = $region41
    $region40: #{_forward_dense.1} parent=1 // pred_region
      _
    $region41: #{_forward_dense.1} parent=1 // pred_fallthru
      _
    // Predicated region
    $region42: #{_forward_dense.1} parent=1 // pred_check
      _
    $region43: #{_forward_dense.1} parent=1 // pred_check_branch
      %418 = sbr.rel (0) target = $region45
    $region44: #{_forward_dense.1} parent=1 // pred_region
      _
    $region45: #{_forward_dense.1} parent=1 // pred_fallthru
      _
    // Predicated region
    $region46: #{_forward_dense.1} parent=1 // pred_check
      _
    $region47: #{_forward_dense.1} parent=1 // pred_check_branch
      %420 = sbr.rel (0) target = $region49
    $region48: #{_forward_dense.1} parent=1 // pred_region
      _
    $region49: #{_forward_dense.1} parent=1 // pred_fallthru
      _
    // Predicated region
    $region50: #{_forward_dense.1} parent=1 // pred_check
      _
    $region51: #{_forward_dense.1} parent=1 // pred_check_branch
      %422 = sbr.rel (0) target = $region53
    $region52: #{_forward_dense.1} parent=1 // pred_region
      _
    $region53: #{_forward_dense.1} parent=1 // pred_fallthru
      _
    %423 = vsyncpa [#allocation3], 1

</llo_original>
